<compile_context>
chip_gen: v7x
topology: tpu7x:2x2x1
jax: 0.10.0
libtpu: 0.0.40
codegen_flags: <defaults>
</compile_context>

<pallas_src>
import math

import jax
import jax.numpy as jnp
from jax.experimental import pallas as pl
from jax.experimental.pallas import tpu as pltpu

_ACT_VMEM_BUDGET = 8 * 1024 * 1024  # target bytes for activation blocks per grid step


def _conv_gemm_kernel(x_ref, w_ref, b_ref, o_ref):
    """One GEMM tile of the folded conv.

    x_ref : (1, block_m, 9*Cin)     im2col rows (compute dtype, e.g. bf16)
    w_ref : (9*Cin, block_cout)     folded conv weights (compute dtype)
    b_ref : (1, block_cout)         bias (f32)
    o_ref : (1, block_m, block_cout)
    """
    acc = jnp.dot(x_ref[0], w_ref[...], preferred_element_type=jnp.float32)
    acc = acc + b_ref[...]                       # (1, block_cout) broadcasts
    o_ref[...] = acc[None].astype(o_ref.dtype)


def _largest_divisor(n, limit, quantum):
    """Largest multiple of `quantum` dividing `n` with value <= limit (or None)."""
    best = None
    for d in range(quantum, min(n, limit) + 1, quantum):
        if n % d == 0:
            best = d
    return best


def downsample(x_nchw, weight_oihw, bias, *, compute_dtype=jnp.bfloat16,
               block_m=None, block_cout=None):
    """Conv2d(dim, dim, 3, stride=2, padding=1) with PyTorch NCHW semantics."""
    B, C, H, W = x_nchw.shape
    Ho = (H + 2 - 3) // 2 + 1
    Wo = (W + 2 - 3) // 2 + 1
    M = Ho * Wo

    # ---- layout glue (single fused bf16 im2col; all MACs run in the kernel) ----
    x = jnp.transpose(x_nchw, (0, 2, 3, 1)).astype(compute_dtype)   # NHWC
    xp = jnp.pad(x, ((0, 0), (1, 1), (1, 1), (0, 0)))               # conv padding=1
    taps = [xp[:, kh:kh + 2 * Ho:2, kw:kw + 2 * Wo:2, :]            # (B, Ho, Wo, C)
            for kh in range(3) for kw in range(3)]
    im2col = jnp.concatenate(taps, axis=-1).reshape(B, M, 9 * C)

    # Folded weights: OIHW -> HWIO -> (9*Cin, Cout); bias stays f32 for the acc.
    w2d = (jnp.transpose(weight_oihw, (2, 3, 1, 0))
           .reshape(9 * C, C).astype(compute_dtype))
    b2d = bias.reshape(1, C).astype(jnp.float32)

    # ---- tile selection (VMEM-budget aware) ----
    itemsize = jnp.dtype(compute_dtype).itemsize
    if block_cout is None:
        if C <= 256 or C % 128 != 0:
            block_cout = C                       # small / odd C: full lanes, one tile
        else:
            block_cout = 256 if (C % 256 == 0 and C <= 1024) else 128
    assert C % block_cout == 0 and (block_cout == C or block_cout % 128 == 0)

    if block_m is None:
        # per im2col row: double-buffered input + double-buffered output + f32 acc
        bytes_per_row = (9 * C * itemsize * 2 +
                         block_cout * itemsize * 2 +
                         block_cout * 4)
        target = max(8, min(2048, _ACT_VMEM_BUDGET // bytes_per_row))
        block_m = _largest_divisor(M, target, 8) or M
    assert M % block_m == 0 and (block_m == M or block_m % 8 == 0)

    grid = (B, C // block_cout, M // block_m)    # innermost axis: M tiles
    # Weight / bias index_maps are invariant along the inner M axis, so their
    # blocks are not re-fetched every step (no per-step weight DMA traffic).

    out_flat = pl.pallas_call(
        _conv_gemm_kernel,
        out_shape=jax.ShapeDtypeStruct((B, M, C), compute_dtype),
        grid_spec=pltpu.PrefetchScalarGridSpec(
            num_scalar_prefetch=0,
            grid=grid,
            in_specs=[
                pl.BlockSpec((1, block_m, 9 * C), lambda b, co, t: (b, t, 0)),
                pl.BlockSpec((9 * C, block_cout), lambda b, co, t: (0, co)),
                pl.BlockSpec((1, block_cout), lambda b, co, t: (0, co)),
            ],
            out_specs=pl.BlockSpec((1, block_m, block_cout),
                                   lambda b, co, t: (b, t, co)),
        ),
        compiler_params=pltpu.CompilerParams(
            dimension_semantics=("parallel", "parallel", "parallel"),
            vmem_limit_bytes=32 * 1024 * 1024),
    )(im2col, w2d, b2d)

    # (B, Ho*Wo, Cout) -> NCHW; cast back to the caller's dtype during the transpose.
    out = out_flat.reshape(B, Ho, Wo, C).transpose(0, 3, 1, 2)
    return out.astype(x_nchw.dtype)


def _reference(x_nchw, weight_oihw, bias):
    y = jax.lax.conv_general_dilated(
        x_nchw, weight_oihw,
        window_strides=(2, 2),
        padding=((1, 1), (1, 1)),
        dimension_numbers=("NCHW", "OIHW", "NCHW"))
    return y + bias[None, :, None, None]


if __name__ == "__main__":
    key = jax.random.PRNGKey(0)
    B, C, H, W = 2, 4, 16, 16

    kx, kw_, kb = jax.random.split(key, 3)
    x = jax.random.normal(kx, (B, C, H, W), dtype=jnp.float32)

    # Deterministic Conv2d(dim, dim, 3, 2, 1) parameters (PyTorch-style bound).
    fan_in = C * 3 * 3
    bound = 1.0 / math.sqrt(fan_in)
    weight = jax.random.uniform(kw_, (C, C, 3, 3), jnp.float32, -bound, bound)
    bias = jax.random.uniform(kb, (C,), jnp.float32, -bound, bound)

    # block_m=32 forces a 2-step M-tile axis at this small size to exercise tiling.
    out = downsample(x, weight, bias, block_m=32)
    out = jax.block_until_ready(out)

    # Reference on bf16-rounded inputs (the kernel computes bf16 x bf16 -> f32).
    xb = x.astype(jnp.bfloat16).astype(jnp.float32)
    wb = weight.astype(jnp.bfloat16).astype(jnp.float32)
    ref = _reference(xb, wb, bias)

    assert out.shape == (B, C, H // 2, W // 2), out.shape
    max_err = float(jnp.max(jnp.abs(out - ref)))
    assert max_err < 2e-2, f"mismatch vs reference conv (max err {max_err})"

    print("KERNEL_OK")
</pallas_src>

<mosaic_0001>
module attributes {stable_mosaic.version = 11 : i64} {
  func.func @_conv_gemm_kernel(%arg0: i32, %arg1: i32, %arg2: i32, %arg3: memref<1x32x36xbf16, #tpu.memory_space<vmem>>, %arg4: memref<36x4xbf16, #tpu.memory_space<vmem>>, %arg5: memref<1x4xf32, #tpu.memory_space<vmem>>, %arg6: memref<1x32x4xbf16, #tpu.memory_space<vmem>>) attributes {dimension_semantics = [#tpu.dimension_semantics<parallel>, #tpu.dimension_semantics<parallel>, #tpu.dimension_semantics<parallel>], iteration_bounds = array<i64: 2, 1, 2>, scalar_prefetch = 0 : i64, scratch_operands = 0 : i64, tpu.core_type = #tpu.core_type<tc>, window_params = [{transform_indices = @transform_0, window_bounds = array<i64: 1, 32, 36>}, {transform_indices = @transform_1, window_bounds = array<i64: 36, 4>}, {transform_indices = @transform_2, window_bounds = array<i64: 1, 4>}, {transform_indices = @transform_3, window_bounds = array<i64: 1, 32, 4>}]} {
    %c0 = arith.constant 0 : index
    %c0_0 = arith.constant 0 : index
    %c0_1 = arith.constant 0 : index
    %0 = vector.load %arg3[%c0, %c0_0, %c0_1] : memref<1x32x36xbf16, #tpu.memory_space<vmem>>, vector<1x32x36xbf16>
    %1 = vector.shape_cast %0 : vector<1x32x36xbf16> to vector<32x36xbf16>
    %c0_2 = arith.constant 0 : index
    %c0_3 = arith.constant 0 : index
    %2 = vector.load %arg4[%c0_2, %c0_3] : memref<36x4xbf16, #tpu.memory_space<vmem>>, vector<36x4xbf16>
    %cst = arith.constant dense<0.000000e+00> : vector<32x4xf32>
    %3 = tpu.matmul %1, %2, %cst {dimension_numbers = #tpu.dot_dimension_numbers<[1], [0], [0], [1], [0, 0, 1, 1], [], []>} : vector<32x36xbf16>, vector<36x4xbf16>, vector<32x4xf32> -> vector<32x4xf32>
    %c0_4 = arith.constant 0 : index
    %c0_5 = arith.constant 0 : index
    %4 = vector.load %arg5[%c0_4, %c0_5] : memref<1x4xf32, #tpu.memory_space<vmem>>, vector<1x4xf32>
    %5 = vector.broadcast %4 : vector<1x4xf32> to vector<32x4xf32>
    %6 = arith.addf %3, %5 : vector<32x4xf32>
    %7 = vector.shape_cast %6 : vector<32x4xf32> to vector<1x32x4xf32>
    %8 = arith.truncf %7 : vector<1x32x4xf32> to vector<1x32x4xbf16>
    %c0_6 = arith.constant 0 : index
    %c0_7 = arith.constant 0 : index
    %c0_8 = arith.constant 0 : index
    %9 = vector.load %arg6[%c0_6, %c0_7, %c0_8] : memref<1x32x4xbf16, #tpu.memory_space<vmem>>, vector<1x32x4xbf16>
    tpu.vector_store %arg6[%c0_6, %c0_7, %c0_8], %8 {strides = array<i32>} : memref<1x32x4xbf16, #tpu.memory_space<vmem>>, vector<1x32x4xbf16>,
    return
  }
  func.func @transform_0(%arg0: i32, %arg1: i32, %arg2: i32) -> (i32, i32, i32) {
    %c0_i32 = arith.constant 0 : i32
    %c0_i32_0 = arith.constant 0 : i32
    return %arg0, %arg2, %c0_i32 : i32, i32, i32
  }
  func.func @transform_1(%arg0: i32, %arg1: i32, %arg2: i32) -> (i32, i32) {
    %c0_i32 = arith.constant 0 : i32
    %c0_i32_0 = arith.constant 0 : i32
    return %c0_i32, %arg1 : i32, i32
  }
  func.func @transform_2(%arg0: i32, %arg1: i32, %arg2: i32) -> (i32, i32) {
    %c0_i32 = arith.constant 0 : i32
    %c0_i32_0 = arith.constant 0 : i32
    return %c0_i32, %arg1 : i32, i32
  }
  func.func @transform_3(%arg0: i32, %arg1: i32, %arg2: i32) -> (i32, i32, i32) {
    %c0_i32 = arith.constant 0 : i32
    return %arg0, %arg2, %arg1 : i32, i32, i32
  }
}

</mosaic_0001>

<llo_original>
// kernel: tpu_custom_call.1
$region0: #{tpu_custom_call.1}
  #allocation0 [shape = 'u32[]', space=smem, size = 0x4, offset = 0x4, fixed_abs, tag = 'smem constant byte address 0x4 - core index']
  #allocation1 [shape = 'u32[144,128]{1,0:T(1,128)}', space=vmem, size = 0x12000, scoped, tag = 'internal scratch']
  %s0 = inlined_call_operand.vmem [shape: bf16[2,64,36], index: 0, kind: input, shape index: {}]
  %s1 = inlined_call_operand.vmem [shape: bf16[36,4], index: 1, kind: input, shape index: {}]
  %s2 = inlined_call_operand.vmem [shape: f32[1,4], index: 2, kind: input, shape index: {}]
  %s3 = inlined_call_operand.vmem [shape: bf16[2,64,4], index: 3, kind: output, shape index: {}]
  %s4 = sld [smem:[#allocation0]]
  $region45: #{tpu_custom_call.1} parent=0
    _
  %s6 = ssub.s32 1, %s4
  %s7 = scalar_select 0, %s6, %s4
  loop: start=0, step=1, limit=6
  $region2: #{tpu_custom_call.1} parent=0 // loop_pre_header
    _
  $region3: #{tpu_custom_call.1} parent=0 // loop_header
    %s9 = sphi 0, %s13
    %p10 = scmp.ge.s32.totalorder %s9, 6
    %s16 = sphi 0, %s35
    %s17 = sphi 0, %s31
    %s18 = sphi 0, %s27
    %s19 = sphi 0, %s16
    %s20 = sphi 0, %s17
    %s21 = sphi 0, %s18
    %s22 = sphi 0, %s19
    %s23 = sphi 0, %s20
    %s24 = sphi 0, %s21
    %s40 = sphi 0, %s42
    %s43 = sphi 0, %s40
    %s44 = sphi 0, %s43
    %s60 = sphi 0, %s44
    %s66 = sphi 0, %s68
    %s69 = sphi 0, %s66
    %s70 = sphi 0, %s69
    %s86 = sphi 0, %s70
    %s92 = sphi 0, %s94
    %s95 = sphi 0, %s92
    %s96 = sphi 0, %s95
    %s112 = sphi 0, %s96
    %s122 = sphi 0, %s124
    %s125 = sphi 0, %s122
    %s126 = sphi 0, %s125
    %s142 = sphi 0, %s126
  $region4: #{tpu_custom_call.1} parent=0 // loop_header_branch
    %12 = sbr.rel (%p10) target = $region8
  $region5: #{tpu_custom_call.1} parent=0 // loop_body
    %s14 = ssub.s32 %s9, 1
    %s15 = ssub.s32 %s9, 2
    %s25 = sadd.s32 1, %s18
    %p26 = scmp.ge.s32.totalorder %s25, 2
    %s27 = scalar_select %p26, 0, %s25
    %s28 = sadd.s32 1, %s17
    %s29 = scalar_select %p26, %s28, %s17
    %p30 = scmp.ge.s32.totalorder %s29, 1
    %s31 = scalar_select %p30, 0, %s29
    %s32 = sadd.s32 1, %s16
    %s33 = scalar_select %p30, %s32, %s16
    %p34 = scmp.ge.s32.totalorder %s33, 2
    %s35 = scalar_select %p34, 0, %s33
    %s36 = ssub.s32 %s16, %s35
    %s37 = ssub.s32 %s18, %s27
    %s38 = sor.u32 %s36, %s37
    %p39 = scmp.eq.s32.totalorder %s38, 0
    %s41 = sadd.s32 %s40, 1
    %s42 = scalar_select %p39, %s40, %s41
    %p45 = pneg %p39
    %p46 = scmp.eq.s32.totalorder %s9, 3
    %p47 = por %p45, %p46
    %p48 = scmp.ne.s32.totalorder %s40, %s43
    %p49 = scmp.eq.s32.totalorder %s9, 0
    %p50 = por %p48, %p49
    %p51 = scmp.ne.s32.totalorder %s40, %s43
    %p52 = scmp.eq.s32.totalorder %s14, 3
    %p53 = por %p51, %p52
    %p54 = scmp.ne.s32.totalorder %s43, %s44
    %p55 = scmp.eq.s32.totalorder %s14, 0
    %p56 = por %p54, %p55
    %p57 = scmp.ne.s32.totalorder %s43, %s44
    %p58 = scmp.eq.s32.totalorder %s15, 3
    %p59 = por %p57, %p58
    %p61 = scmp.ne.s32.totalorder %s44, %s60
    %p62 = scmp.eq.s32.totalorder %s15, 0
    %p63 = por %p61, %p62
    %s64 = ssub.s32 %s17, %s31
    %p65 = scmp.eq.s32.totalorder %s64, 0
    %s67 = sadd.s32 %s66, 1
    %s68 = scalar_select %p65, %s66, %s67
    %p71 = pneg %p65
    %p72 = scmp.eq.s32.totalorder %s9, 3
    %p73 = por %p71, %p72
    %p74 = scmp.ne.s32.totalorder %s66, %s69
    %p75 = scmp.eq.s32.totalorder %s9, 0
    %p76 = por %p74, %p75
    %p77 = scmp.ne.s32.totalorder %s66, %s69
    %p78 = scmp.eq.s32.totalorder %s14, 3
    %p79 = por %p77, %p78
    %p80 = scmp.ne.s32.totalorder %s69, %s70
    %p81 = scmp.eq.s32.totalorder %s14, 0
    %p82 = por %p80, %p81
    %p83 = scmp.ne.s32.totalorder %s69, %s70
    %p84 = scmp.eq.s32.totalorder %s15, 3
    %p85 = por %p83, %p84
    %p87 = scmp.ne.s32.totalorder %s70, %s86
    %p88 = scmp.eq.s32.totalorder %s15, 0
    %p89 = por %p87, %p88
    %s90 = ssub.s32 %s17, %s31
    %p91 = scmp.eq.s32.totalorder %s90, 0
    %s93 = sadd.s32 %s92, 1
    %s94 = scalar_select %p91, %s92, %s93
    %p97 = pneg %p91
    %p98 = scmp.eq.s32.totalorder %s9, 3
    %p99 = por %p97, %p98
    %p100 = scmp.ne.s32.totalorder %s92, %s95
    %p101 = scmp.eq.s32.totalorder %s9, 0
    %p102 = por %p100, %p101
    %p103 = scmp.ne.s32.totalorder %s92, %s95
    %p104 = scmp.eq.s32.totalorder %s14, 3
    %p105 = por %p103, %p104
    %p106 = scmp.ne.s32.totalorder %s95, %s96
    %p107 = scmp.eq.s32.totalorder %s14, 0
    %p108 = por %p106, %p107
    %p109 = scmp.ne.s32.totalorder %s95, %s96
    %p110 = scmp.eq.s32.totalorder %s15, 3
    %p111 = por %p109, %p110
    %p113 = scmp.ne.s32.totalorder %s96, %s112
    %p114 = scmp.eq.s32.totalorder %s15, 0
    %p115 = por %p113, %p114
    %s116 = ssub.s32 %s16, %s35
    %s117 = ssub.s32 %s18, %s27
    %s118 = sor.u32 %s116, %s117
    %s119 = ssub.s32 %s17, %s31
    %s120 = sor.u32 %s118, %s119
    %p121 = scmp.eq.s32.totalorder %s120, 0
    %s123 = sadd.s32 %s122, 1
    %s124 = scalar_select %p121, %s122, %s123
    %p127 = pneg %p121
    %p128 = scmp.eq.s32.totalorder %s9, 3
    %p129 = por %p127, %p128
    %p130 = scmp.ne.s32.totalorder %s122, %s125
    %p131 = scmp.eq.s32.totalorder %s9, 0
    %p132 = por %p130, %p131
    %p133 = scmp.ne.s32.totalorder %s122, %s125
    %p134 = scmp.eq.s32.totalorder %s14, 3
    %p135 = por %p133, %p134
    %p136 = scmp.ne.s32.totalorder %s125, %s126
    %p137 = scmp.eq.s32.totalorder %s14, 0
    %p138 = por %p136, %p137
    %p139 = scmp.ne.s32.totalorder %s125, %s126
    %p140 = scmp.eq.s32.totalorder %s15, 3
    %p141 = por %p139, %p140
    %p143 = scmp.ne.s32.totalorder %s126, %s142
    %p144 = scmp.eq.s32.totalorder %s15, 0
    %p145 = por %p143, %p144
    %p146 = scmp.le.s32.totalorder 1, %s9
    %p147 = scmp.lt.s32.totalorder %s9, 5
    %p148 = pnand %p146, %p147
    %p149 = pneg %p148
    // Predicated region
    $region9: #{tpu_custom_call.1} parent=5 // pred_check
      _
    $region10: #{tpu_custom_call.1} parent=5 // pred_check_branch
      %151 = sbr.rel (%p148) target = $region12
    $region11: #{tpu_custom_call.1} parent=5 // pred_region
      %s152 = ssub.s32 %s9, 1
      // Predicated region
      $region13: #{tpu_custom_call.1} parent=11 // pred_check
        %p153 = pneg %p82
      $region14: #{tpu_custom_call.1} parent=11 // pred_check_branch
        %155 = sbr.rel (%p153) target = $region16
      $region15: #{tpu_custom_call.1} parent=11 // pred_region
        %p156 = scmp.lt.s32.totalorder %s20, 0
        %s157 = scalar_select %p156, %s20, 0
        %s158 = smul.addr %s157, 4
        %s159 = scalar_lea.vmem %s1, %s158
      $region16: #{tpu_custom_call.1} parent=11 // pred_fallthru
        _
      // Predicated region
      $region17: #{tpu_custom_call.1} parent=11 // pred_check
        %p160 = pneg %p108
      $region18: #{tpu_custom_call.1} parent=11 // pred_check_branch
        %162 = sbr.rel (%p160) target = $region20
      $region19: #{tpu_custom_call.1} parent=11 // pred_region
        %p163 = scmp.lt.s32.totalorder %s20, 0
        %s164 = scalar_select %p163, %s20, 0
        %s165 = scalar_lea.vmem %s2, %s164
      $region20: #{tpu_custom_call.1} parent=11 // pred_fallthru
        _
    $region12: #{tpu_custom_call.1} parent=5 // pred_fallthru
      _
    %p166 = scmp.lt.s32.totalorder %s9, 4
    // Predicated region
    $region21: #{tpu_custom_call.1} parent=5 // pred_check
      %p167 = pneg %p166
    $region22: #{tpu_custom_call.1} parent=5 // pred_check_branch
      %169 = sbr.rel (%p167) target = $region24
    $region23: #{tpu_custom_call.1} parent=5 // pred_region
      // Predicated region
      $region25: #{tpu_custom_call.1} parent=23 // pred_check
        %p170 = pneg %p50
      $region26: #{tpu_custom_call.1} parent=23 // pred_check_branch
        %172 = sbr.rel (%p170) target = $region28
      $region27: #{tpu_custom_call.1} parent=23 // pred_region
        %s173 = smul.u32 4, %s18
        %p174 = scmp.lt.s32.totalorder %s16, 1
        %s175 = scalar_select %p174, %s16, 1
        %p176 = scmp.lt.s32.totalorder %s173, 7
        %s177 = scalar_select %p176, %s173, 7
        %s178 = smul.addr %s175, 8
        %s179 = sadd.s32 %s177, %s178
        %s180 = smul.addr %s179, 4
        %s181 = scalar_lea.vmem %s0, %s180
        %s182 = smul.u32 4, %s18
      $region28: #{tpu_custom_call.1} parent=23 // pred_fallthru
        _
    $region24: #{tpu_custom_call.1} parent=5 // pred_fallthru
      _
    %p183 = scmp.le.s32.totalorder 1, %s9
    %p184 = scmp.lt.s32.totalorder %s9, 5
    %p185 = pnand %p183, %p184
    %p186 = pneg %p185
    // Predicated region
    $region29: #{tpu_custom_call.1} parent=5 // pred_check
      _
    $region30: #{tpu_custom_call.1} parent=5 // pred_check_branch
      %188 = sbr.rel (%p185) target = $region32
    $region31: #{tpu_custom_call.1} parent=5 // pred_region
      %s189 = ssub.s32 %s9, 1
      %s190 = smul.u32 4, %s21
      %p191 = scmp.lt.s32.totalorder %s19, 1
      %s192 = scalar_select %p191, %s19, 1
      %p193 = scmp.lt.s32.totalorder %s190, 7
      %s194 = scalar_select %p193, %s190, 7
      %s195 = smul.addr %s192, 8
      %s196 = sadd.s32 %s194, %s195
      %s197 = smul.addr %s196, 4
      %s198 = scalar_lea.vmem %s0, %s197
      %p199 = pneg %p56
      %p200 = pneg %p53
      %p201 = scmp.lt.s32.totalorder %s20, 0
      %s202 = scalar_select %p201, %s20, 0
      %s203 = smul.addr %s202, 4
      %s204 = scalar_lea.vmem %s1, %s203
      %p205 = pneg %p82
      %p206 = pneg %p79
      %p207 = scmp.lt.s32.totalorder %s20, 0
      %s208 = scalar_select %p207, %s20, 0
      %s209 = scalar_lea.vmem %s2, %s208
      %p210 = pneg %p108
      %p211 = pneg %p105
      %p212 = pneg %p138
      %p213 = pneg %p135
      %s214 = smul.u32 4, %s21
      %p215 = scmp.lt.s32.totalorder %s19, 1
      %s216 = scalar_select %p215, %s19, 1
      %p217 = scmp.lt.s32.totalorder %s214, 7
      %s218 = scalar_select %p217, %s214, 7
      %p219 = scmp.lt.s32.totalorder %s20, 0
      %s220 = scalar_select %p219, %s20, 0
      %s221 = sadd.s32 %s220, %s218
      %s222 = smul.addr %s216, 8
      %s223 = sadd.s32 %s221, %s222
      %s224 = smul.addr %s223, 4
      %s225 = scalar_lea.vmem %s3, %s224
      %s226 = smul.u32 4, %s21
      %p227 = scmp.lt.s32.totalorder %s19, 1
      %s228 = scalar_select %p227, %s19, 1
      %p229 = scmp.lt.s32.totalorder %s226, 7
      %s230 = scalar_select %p229, %s226, 7
      %s231 = smul.addr %s228, 8
      %s232 = sadd.s32 %s230, %s231
      %s233 = smul.addr %s232, 4
      %s234 = scalar_lea.vmem %s0, %s233
      %s235 = smul.u32 4, %s21
      %p236 = scmp.lt.s32.totalorder %s20, 0
      %s237 = scalar_select %p236, %s20, 0
      %s238 = smul.addr %s237, 4
      %s239 = scalar_lea.vmem %s1, %s238
      %p240 = scmp.lt.s32.totalorder %s20, 0
      %s241 = scalar_select %p240, %s20, 0
      %s242 = scalar_lea.vmem %s2, %s241
      %s243 = smul.u32 4, %s21
      %p244 = scmp.lt.s32.totalorder %s19, 1
      %s245 = scalar_select %p244, %s19, 1
      %p246 = scmp.lt.s32.totalorder %s243, 7
      %s247 = scalar_select %p246, %s243, 7
      %p248 = scmp.lt.s32.totalorder %s20, 0
      %s249 = scalar_select %p248, %s20, 0
      %s250 = sadd.s32 %s249, %s247
      %s251 = smul.addr %s245, 8
      %s252 = sadd.s32 %s250, %s251
      %s253 = smul.addr %s252, 4
      %s254 = scalar_lea.vmem %s3, %s253
      %s255 = smul.u32 4, %s21
      %v257 = vld [vmem:[%s234] sm:$0xf]
      %v258 = vld [vmem:[%s234 + $0x4] sm:$0xf]
      %v259 = vld [vmem:[%s234 + $0x8] sm:$0xf]
      %v260 = vld [vmem:[%s234 + $0xc] sm:$0xf]
      %v261 = vld [vmem:[%s239] sm:$0xf]
      %v262 = vld [vmem:[%s239 + $0x4] sm:$0xf]
      %v263 = vld [vmem:[%s239 + $0x8] sm:$0xf]
      %v264 = vld [vmem:[%s239 + $0xc] sm:$0xf]
      %v265 = vld [vmem:[%s239 + $0x10] sm:$0x3]
      %v266 = vld [vmem:[%s242] sm:$0x1]
      %v268 = vlaneseq
      %v269 = vshrl.u32 %v268, 7
      %v270 = vsub.s32 0, %v269
      %v271 = vrot.slane %v266, %v270
      %v277 = vunpack.c.l.b16 %v257
      %v278 = vunpack.c.l.b16 %v258
      %v279 = vunpack.c.l.b16 %v259
      %v280 = vunpack.c.l.b16 %v260
      %v281 = vpack.c.b16 %v278, %v277
      %v282 = vpack.c.b16 %v280, %v279
      %v288 = vunpack.c.l.b16 %v261
      %v289 = vunpack.c.l.b16 %v262
      %v290 = vunpack.c.l.b16 %v263
      %v291 = vunpack.c.l.b16 %v264
      %v292 = vunpack.c.l.b16 %v265
      %v293 = vpack.c.b16 %v289, %v288
      %v294 = vpack.c.b16 %v291, %v290
      %v295 = vpack.c.b16 %v292, %v292
      %vm298 = vcmask 293888
      %v300 = vsel %vm298, %v281, 0
      %v303 = vsel %vm298, %v282, 0
      %vm305 = vcmask 1041408
      %v307 = vsel %vm305, %v295, 0
      %309 = vmatprep.subr.bf16.mxu0 0
      %310 = vmatpush1.bf16.msra.mxu0 %v293
      %311 = vmatprep.subr.bf16.mxu0 0
      %312 = vmatpush1.bf16.msra.mxu0 %v294
      %313 = vmatprep.subr.bf16.mxu0 0
      %314 = vmatpush1.bf16.msra.mxu0 %v307
      %315 = vmatprep.subr.bf16.mxu0 0
      %316 = vmatpush1.bf16.msra.mxu0 0
      %317 = vmatprep.subr.bf16.mxu0 0
      %318 = vmatpush1.bf16.msra.mxu0 0
      %319 = vmatprep.subr.bf16.mxu0 0
      %320 = vmatpush1.bf16.msra.mxu0 0
      %321 = vmatprep.subr.bf16.mxu0 0
      %322 = vmatpush1.bf16.msra.mxu0 0
      %323 = vmatprep.subr.bf16.mxu0 0
      %324 = vmatpush1.bf16.msra.mxu0 0
      %325 = vmatprep.subr.bf16.mxu0 0
      %326 = vmatpush1.bf16.msra.mxu0 0
      %327 = vmatprep.subr.bf16.mxu0 0
      %328 = vmatpush1.bf16.msra.mxu0 0
      %329 = vmatprep.subr.bf16.mxu0 0
      %330 = vmatpush1.bf16.msra.mxu0 0
      %331 = vmatprep.subr.bf16.mxu0 0
      %332 = vmatpush1.bf16.msra.mxu0 0
      %333 = vmatprep.subr.bf16.mxu0 0
      %334 = vmatpush1.bf16.msra.mxu0 0
      %335 = vmatprep.subr.bf16.mxu0 0
      %336 = vmatpush1.bf16.msra.mxu0 0
      %337 = vmatprep.subr.bf16.mxu0 0
      %338 = vmatpush1.bf16.msra.mxu0 0
      %339 = vmatprep.subr.bf16.mxu0 0
      %340 = vmatpush1.bf16.msra.mxu0 0
      %341 = vmatprep.mubr.bf16.mxu0 0
      %342 = vmatmul.mubr.bf16.gmra.mrb[0].mxu0 %v300
      %v343 = vpop.f32.mrb[0].mxu0
      %v344 = vadd.f32 %v271, %v343
      %v345 = vpop.f32.mrb[0].mxu0
      %v346 = vpop.f32.mrb[0].mxu0
      %v347 = vadd.f32 %v271, %v346
      %v348 = vpop.f32.mrb[0].mxu0
      %349 = vmatprep.mubr.bf16.mxu0 0
      %350 = vmatmul.mubr.bf16.gmra.mrb[0].mxu0 %v303
      %v351 = vpop.f32.mrb[0].mxu0
      %v352 = vadd.f32 %v271, %v351
      %v353 = vpop.f32.mrb[0].mxu0
      %v354 = vpop.f32.mrb[0].mxu0
      %v355 = vadd.f32 %v271, %v354
      %v356 = vpop.f32.mrb[0].mxu0
      %357 = vdwg.mxu0
      %v358 = vpack.c.bf16 %v347, %v344
      %v359 = vpack.c.bf16 %v355, %v352
      %v362 = vunpack.c.l.b16 %v358
      %v363 = vunpack.c.h.b16 %v358
      %v364 = vunpack.c.l.b16 %v359
      %v365 = vunpack.c.h.b16 %v359
      %v366 = vpack.c.b16 %v362, %v362
      %v367 = vpack.c.b16 %v363, %v363
      %v368 = vpack.c.b16 %v364, %v364
      %v369 = vpack.c.b16 %v365, %v365
      %vm374 = vcmask 27648
      %375 = vst.msk [vmem:[%s254] sm:$0xf] %vm374, %v366
      %376 = vst.msk [vmem:[%s254 + $0x4] sm:$0xf] %vm374, %v367
      %377 = vst.msk [vmem:[%s254 + $0x8] sm:$0xf] %vm374, %v368
      %378 = vst.msk [vmem:[%s254 + $0xc] sm:$0xf] %vm374, %v369
      %s379 = smul.u32 4, %s21
      %p380 = scmp.lt.s32.totalorder %s19, 1
      %s381 = scalar_select %p380, %s19, 1
      %p382 = scmp.lt.s32.totalorder %s379, 7
      %s383 = scalar_select %p382, %s379, 7
      %p384 = scmp.lt.s32.totalorder %s20, 0
      %s385 = scalar_select %p384, %s20, 0
      %s386 = sadd.s32 %s385, %s383
      %s387 = smul.addr %s381, 8
      %s388 = sadd.s32 %s386, %s387
      %s389 = smul.addr %s388, 4
      %s390 = scalar_lea.vmem %s3, %s389
      // Predicated region
      $region33: #{tpu_custom_call.1} parent=31 // pred_check
        %p391 = pneg %p135
      $region34: #{tpu_custom_call.1} parent=31 // pred_check_branch
        %393 = sbr.rel (%p391) target = $region36
      $region35: #{tpu_custom_call.1} parent=31 // pred_region
        %s394 = smul.u32 4, %s21
      $region36: #{tpu_custom_call.1} parent=31 // pred_fallthru
        _
    $region32: #{tpu_custom_call.1} parent=5 // pred_fallthru
      _
    %p395 = scmp.le.s32.totalorder 2, %s9
    // Predicated region
    $region37: #{tpu_custom_call.1} parent=5 // pred_check
      %p396 = pneg %p395
    $region38: #{tpu_custom_call.1} parent=5 // pred_check_branch
      %398 = sbr.rel (%p396) target = $region40
    $region39: #{tpu_custom_call.1} parent=5 // pred_region
      %s399 = ssub.s32 %s9, 2
      // Predicated region
      $region41: #{tpu_custom_call.1} parent=39 // pred_check
        %p400 = pneg %p141
      $region42: #{tpu_custom_call.1} parent=39 // pred_check_branch
        %402 = sbr.rel (%p400) target = $region44
      $region43: #{tpu_custom_call.1} parent=39 // pred_region
        %s403 = smul.u32 4, %s24
        %p404 = scmp.lt.s32.totalorder %s22, 1
        %s405 = scalar_select %p404, %s22, 1
        %p406 = scmp.lt.s32.totalorder %s403, 7
        %s407 = scalar_select %p406, %s403, 7
        %p408 = scmp.lt.s32.totalorder %s23, 0
        %s409 = scalar_select %p408, %s23, 0
        %s410 = sadd.s32 %s409, %s407
        %s411 = smul.addr %s405, 8
        %s412 = sadd.s32 %s410, %s411
        %s413 = smul.addr %s412, 4
        %s414 = scalar_lea.vmem %s3, %s413
      $region44: #{tpu_custom_call.1} parent=39 // pred_fallthru
        _
    $region40: #{tpu_custom_call.1} parent=5 // pred_fallthru
      _
  $region6: #{tpu_custom_call.1} parent=0 // loop_footer
    %s13 = sadd.s32 1, %s9
  $region7: #{tpu_custom_call.1} parent=0 // loop_footer_branch
    %8 = sbr.rel target = $region3
  $region8: #{tpu_custom_call.1} parent=0 // loop_exit
    _

</llo_original>
